<compile_context>
chip_gen: v7x
topology: tpu7x:2x2x1
jax: 0.10.0
libtpu: 0.0.40
codegen_flags: <defaults>
</compile_context>

<pallas_src>
import jax
import jax.numpy as jnp
from jax.experimental import pallas as pl
from jax.experimental.pallas import tpu as pltpu


def _round_up(x, m):
    return (x + m - 1) // m * m


def _choose_row_block(n_rows, bytes_per_row, target_bytes=2 << 20, min_steps=2):
    """Row (sublane) block for the batch-parallel grid axis.

    Preferences, in order:
      * no padded rows (so the wrapper never has to slice-copy the output),
      * >= min_steps grid steps, so the "parallel" axis can shard across the
        two TensorCores of a v7x chip (harmless on 1-TC v5e/v6e),
      * ~target_bytes per block (amortizes the ~0.35us per-grid-step cost),
      * multiples of 256 rows when possible (full v6e/v7x MXU M tile).
    Returns (block_rows, padded_rows).
    """
    if n_rows % 8 != 0:
        # A non-multiple-of-8 extent is only legal as a single full block.
        if n_rows * bytes_per_row <= 4 * target_bytes:
            return n_rows, n_rows
        n_pad = _round_up(n_rows, 8)
    else:
        n_pad = n_rows
    cap = min(n_pad, max(8, target_bytes // max(1, bytes_per_row) // 8 * 8))
    if n_pad >= 8 * min_steps:                      # leave room for >= 2 steps
        cap = min(cap, max(8, n_pad // min_steps // 8 * 8))
    blk = 8
    for step in (256, 8):                           # prefer full MXU M tiles
        cand = cap // step * step
        while cand >= step and n_pad % cand != 0:
            cand -= step
        if cand >= step:
            blk = cand
            break
    return blk, n_pad


def _vmem_limit_bytes(blocks, headroom=8 << 20):
    """blocks: iterable of (n_buffers, sublane, lane, itemsize) VMEM residents.

    Lane/sublane extents are padded to the (8, 128) VMEM tile (this also counts
    the ~128x padding of lane-1 index columns).  Floored at the 32 MiB scoped
    default and capped at 60 MiB so the budget stays inside v7x's 64 MiB/TC —
    tables needing more should take the HBM DMA-gather path (see TODO above).
    """
    total = headroom
    for nbuf, r, c, isz in blocks:
        total += int(nbuf) * _round_up(int(r), 8) * _round_up(int(c), 128) * int(isz)
    return int(min(max(total, 32 << 20), 60 << 20))


def _gather_kernel(idx_ref, table_ref, out_ref, acc_ref):
    """One-hot MXU gather for one block of flattened token rows, one vocab chunk.

    idx_ref  : VMEM [R, 1]   int32 flattened (batch*seq) word indices
    table_ref: VMEM [TV, D]  current vocab chunk of the embedding table
    out_ref  : VMEM [R, D]   gathered embeddings (written on the last chunk)
    acc_ref  : VMEM [R, D]   f32 accumulator, resident across the vocab axis
    """
    k = pl.program_id(1)

    @pl.when(k == 0)
    def _init():
        acc_ref[...] = jnp.zeros_like(acc_ref)

    rows = idx_ref.shape[0]
    tv = table_ref.shape[0]
    local = idx_ref[...] - k * tv                                    # [R, 1]
    onehot = (local == jax.lax.broadcasted_iota(jnp.int32, (rows, tv), 1)
              ).astype(table_ref.dtype)                              # [R, TV]
    acc_ref[...] += jnp.dot(onehot, table_ref[...],
                            preferred_element_type=jnp.float32)

    @pl.when(k == pl.num_programs(1) - 1)
    def _done():
        out_ref[...] = acc_ref[...].astype(out_ref.dtype)


def _mean_kernel(idx_ref, inv_ref, table_ref, out_ref, acc_ref):
    """Sequence mean without materializing [B, L, D].

      counts[b, v] = #{l : idx[b, l] == v}          (sublane reduce over L)
      acc[b, :]   += counts[b, :] @ table_chunk      (MXU, f32 accumulate)
      mean[b, :]   = acc[b, :] * (1 / length[b])     (VPU, last chunk only)

    Padded sequence positions carry index 0 and therefore add table[0] to the
    sum — exactly what nn.Embedding(padding_idx=0) + torch.sum does (the
    pretrained row 0 is copied verbatim; padding_idx only zeroes gradients).
    Zero-length rows produce inf/nan, like the torch division.
    """
    k = pl.program_id(1)

    @pl.when(k == 0)
    def _init():
        acc_ref[...] = jnp.zeros_like(acc_ref)

    tb, seq = idx_ref.shape[0], idx_ref.shape[1]
    tv = table_ref.shape[0]
    local = idx_ref[...] - k * tv                                    # [TB, L, 1]
    onehot = (local == jax.lax.broadcasted_iota(jnp.int32, (tb, seq, tv), 2)
              ).astype(table_ref.dtype)                              # [TB, L, TV]
    counts = jnp.sum(onehot, axis=1)                                 # [TB, TV]
    acc_ref[...] += jnp.dot(counts, table_ref[...],
                            preferred_element_type=jnp.float32)

    @pl.when(k == pl.num_programs(1) - 1)
    def _done():
        out_ref[...] = (acc_ref[...] * inv_ref[...]).astype(out_ref.dtype)


def pretrained_embedding_forward(table, indices, lengths, mean_sequence=False,
                                 compute_dtype=jnp.bfloat16, out_dtype=None):
    """JAX/Pallas equivalent of PretrainedEmbedding.forward (post-tokenization).

    table:   [V, D] pretrained embedding matrix (row 0 = padding row, copied
             verbatim just like Embedding.weight.data.copy_()).
    indices: [B, L] int32 word indices (0 = padding / unknown word; out-of-range
             indices silently gather zeros instead of raising like torch).
    lengths: [B]    int32 true sequence lengths.
    compute_dtype: dtype of the MXU operands (table chunk + one-hot). bf16 is
             exact for 0/1 one-hots / small counts and ~3-6x faster on the MXU
             than f32; pass table.dtype for bit-exact gathers from arbitrary
             f32 tables.
    out_dtype: output dtype (default table.dtype, matching torch). bf16 halves
             HBM writeback on the (writeback-bound) gather path.

    Returns (word_embeddings [B, L, D], lengths)   if not mean_sequence
            (mean_embeddings [B, D],    lengths)   if mean_sequence
    """
    table = jnp.asarray(table)
    indices = jnp.asarray(indices, dtype=jnp.int32)
    lengths = jnp.asarray(lengths, dtype=jnp.int32)
    V, D = table.shape
    B, L = indices.shape
    if compute_dtype is None:
        compute_dtype = table.dtype
    if out_dtype is None:
        out_dtype = table.dtype
    c_size = jnp.dtype(compute_dtype).itemsize
    o_size = jnp.dtype(out_dtype).itemsize

    # Vocab chunking: the one-hot is built per [rows, TV] stripe and partial
    # products accumulate in an f32 VMEM scratch, so VMEM use is bounded by TV
    # (a lane-dense multiple of 128, at most 512 = 2 MXU K tiles), not V.
    TV = min(512, _round_up(V, 128))
    Vp = _round_up(V, TV)
    nk = Vp // TV
    table_c = jnp.zeros((Vp, D), compute_dtype).at[:V].set(table.astype(compute_dtype))

    def _table_block_spec():
        # Constant block (nk == 1): single-buffer the largest resident operand.
        # Chunked (nk > 1): keep double-buffering so the next stripe's DMA
        # overlaps the current MXU work.
        try:
            return pl.BlockSpec((TV, D), lambda g, k: (k, 0),
                                pipeline_mode=pl.Buffered(1 if nk == 1 else 2))
        except (TypeError, AttributeError):   # older jax without pipeline_mode
            return pl.BlockSpec((TV, D), lambda g, k: (k, 0))

    table_spec = _table_block_spec()

    if mean_sequence:
        per_row = L * TV * c_size + D * (2 * o_size + 4)      # dominant VMEM/row
        TB, Bp = _choose_row_block(B, per_row)
        if Bp != B:
            indices_m = jnp.zeros((Bp, L), jnp.int32).at[:B].set(indices)
            lengths_m = jnp.zeros((Bp,), jnp.int32).at[:B].set(lengths)
        else:
            indices_m, lengths_m = indices, lengths
        # Indices enter as [Bp, L, 1] so the one-hot is built directly in 3-D
        # (L on sublanes) with no in-kernel lane->sublane relayout.
        idx3 = indices_m.reshape(Bp, L, 1)
        # No maximum() guard: length 0 -> inf/nan, same as the torch division.
        inv_len = (1.0 / lengths_m.astype(jnp.float32)).reshape(Bp, 1)

        vmem = _vmem_limit_bytes([
            ((1 if nk == 1 else 2), TV, D, c_size),   # table chunk buffers
            (2, TB * L, 1, 4),                        # index blocks
            (2, TB, 1, 4),                            # 1/length blocks
            (2, TB, D, o_size),                       # output blocks
            (1, TB, D, 4),                            # f32 accumulator
            (2, TB * L, TV, c_size),                  # one-hot intermediate
            (1, TB, TV, 4),                           # counts intermediate
        ])
        mean_p = pl.pallas_call(
            _mean_kernel,
            out_shape=jax.ShapeDtypeStruct((Bp, D), out_dtype),
            grid=(Bp // TB, nk),
            in_specs=[
                pl.BlockSpec((TB, L, 1), lambda g, k: (g, 0, 0)),
                pl.BlockSpec((TB, 1), lambda g, k: (g, 0)),
                table_spec,
            ],
            out_specs=pl.BlockSpec((TB, D), lambda g, k: (g, 0)),
            scratch_shapes=[pltpu.VMEM((TB, D), jnp.float32)],
            compiler_params=pltpu.CompilerParams(
                dimension_semantics=("parallel", "arbitrary"),
                vmem_limit_bytes=vmem),
        )(idx3, inv_len, table_c)
        mean = mean_p if Bp == B else mean_p[:B]
        return mean, lengths

    # Full-sequence gather over flattened token rows.
    R = B * L
    TR, Rp = _choose_row_block(R, D * o_size + TV * c_size)
    idx_col = indices.reshape(R, 1)
    if Rp != R:
        idx_col = jnp.zeros((Rp, 1), jnp.int32).at[:R].set(idx_col)

    vmem = _vmem_limit_bytes([
        ((1 if nk == 1 else 2), TV, D, c_size),       # table chunk buffers
        (2, TR, 1, 4),                                # lane-1 index blocks
        (2, TR, D, o_size),                           # output blocks
        (1, TR, D, 4),                                # f32 accumulator
        (2, TR, TV, c_size),                          # one-hot intermediate
    ])
    emb_flat = pl.pallas_call(
        _gather_kernel,
        out_shape=jax.ShapeDtypeStruct((Rp, D), out_dtype),
        grid=(Rp // TR, nk),
        in_specs=[pl.BlockSpec((TR, 1), lambda g, k: (g, 0)), table_spec],
        out_specs=pl.BlockSpec((TR, D), lambda g, k: (g, 0)),
        scratch_shapes=[pltpu.VMEM((TR, D), jnp.float32)],
        compiler_params=pltpu.CompilerParams(
            dimension_semantics=("parallel", "arbitrary"),
            vmem_limit_bytes=vmem),
    )(idx_col, table_c)
    if Rp != R:
        emb_flat = emb_flat[:R]
    return emb_flat.reshape(B, L, D), lengths


if __name__ == "__main__":
    key = jax.random.PRNGKey(0)
    k_vec, k_idx = jax.random.split(key)

    # Module __init__ shapes: num_embeddings (vocab) x embedding_dim.
    V, D = 64, 32          # small vocab, hidden=32
    B, L = 2, 8            # batch=2, seq=8

    # Pretrained vectors, snapped to bf16-representable f32 values so the
    # default bf16 compute path is bit-exact against the f32 reference.
    # Row 0 is deliberately NOT zeroed: the torch module copies the pretrained
    # vectors over the padding row and sums it for padded positions, and the
    # kernels reproduce exactly that.
    vectors = jax.random.normal(k_vec, (V, D), dtype=jnp.float32)
    vectors = vectors.astype(jnp.bfloat16).astype(jnp.float32)

    # Host-side tokenization / word2idx lookup is represented by precomputed
    # indices; positions beyond each sentence's length hold index 0 (padding).
    lengths = jnp.array([L, 5], dtype=jnp.int32)
    indices = jax.random.randint(k_idx, (B, L), 1, V, dtype=jnp.int32)
    pos = jnp.arange(L)[None, :]
    indices = jnp.where(pos < lengths[:, None], indices, 0).astype(jnp.int32)

    # Full-sequence embeddings.
    emb, out_lens = pretrained_embedding_forward(vectors, indices, lengths,
                                                 mean_sequence=False)
    emb = jax.block_until_ready(emb)

    # Mean-over-sequence embeddings (separate kernel, no [B, L, D] writeback).
    mean_emb, _ = pretrained_embedding_forward(vectors, indices, lengths,
                                               mean_sequence=True)
    mean_emb = jax.block_until_ready(mean_emb)

    # Pure-JAX reference with identical semantics to the torch forward.
    ref_emb = vectors[indices]                                   # [B, L, D]
    ref_mean = ref_emb.sum(axis=1) / lengths[:, None].astype(jnp.float32)

    assert emb.shape == (B, L, D) and emb.dtype == vectors.dtype
    assert mean_emb.shape == (B, D) and out_lens.shape == (B,)
    assert jnp.allclose(emb, ref_emb, atol=1e-5, rtol=1e-5)
    assert jnp.allclose(mean_emb, ref_mean, atol=1e-5, rtol=1e-5)

    print("KERNEL_OK")
</pallas_src>

<mosaic_0001>
module attributes {stable_mosaic.version = 11 : i64} {
  func.func @_gather_kernel(%arg0: i32, %arg1: i32, %arg2: memref<8x1xi32, #tpu.memory_space<vmem>>, %arg3: memref<128x32xbf16, #tpu.memory_space<vmem>>, %arg4: memref<8x32xf32, #tpu.memory_space<vmem>>, %arg5: memref<8x32xf32, #tpu.memory_space<vmem>>) attributes {dimension_semantics = [#tpu.dimension_semantics<parallel>, #tpu.dimension_semantics<arbitrary>], iteration_bounds = array<i64: 2, 1>, scalar_prefetch = 0 : i64, scratch_operands = 1 : i64, tpu.core_type = #tpu.core_type<tc>, window_params = [{transform_indices = @transform_0, window_bounds = array<i64: 8, 1>}, {pipeline_mode = #tpu.pipeline_mode<synchronous>, transform_indices = @transform_1, window_bounds = array<i64: 128, 32>}, {transform_indices = @transform_2, window_bounds = array<i64: 8, 32>}]} {
    %c0_i32 = arith.constant 0 : i32
    %0 = arith.cmpi eq, %arg1, %c0_i32 : i32
    %1 = arith.extui %0 : i1 to i32
    %c0_i32_0 = arith.constant 0 : i32
    %2 = arith.cmpi ne, %1, %c0_i32_0 : i32
    scf.if %2 {
      %cst_10 = arith.constant 0.000000e+00 : f32
      %21 = vector.broadcast %cst_10 : f32 to vector<8x32xf32>
      %c0_11 = arith.constant 0 : index
      %c0_12 = arith.constant 0 : index
      %22 = vector.load %arg5[%c0_11, %c0_12] : memref<8x32xf32, #tpu.memory_space<vmem>>, vector<8x32xf32>
      tpu.vector_store %arg5[%c0_11, %c0_12], %21 {strides = array<i32>} : memref<8x32xf32, #tpu.memory_space<vmem>>, vector<8x32xf32>,
    } else {
    }
    %c0 = arith.constant 0 : index
    %c0_1 = arith.constant 0 : index
    %3 = vector.load %arg2[%c0, %c0_1] : memref<8x1xi32, #tpu.memory_space<vmem>>, vector<8x1xi32>
    %c128_i32 = arith.constant 128 : i32
    %4 = arith.muli %arg1, %c128_i32 : i32
    %5 = vector.broadcast %4 : i32 to vector<8x1xi32>
    %6 = arith.subi %3, %5 : vector<8x1xi32>
    %7 = tpu.iota {dimensions = array<i32: 1>} : vector<8x128xi32>
    %8 = vector.broadcast %6 : vector<8x1xi32> to vector<8x128xi32>
    %9 = arith.cmpi eq, %8, %7 : vector<8x128xi32>
    %10 = arith.extui %9 : vector<8x128xi1> to vector<8x128xi32>
    %11 = arith.sitofp %10 : vector<8x128xi32> to vector<8x128xf32>
    %12 = arith.truncf %11 : vector<8x128xf32> to vector<8x128xbf16>
    %c0_2 = arith.constant 0 : index
    %c0_3 = arith.constant 0 : index
    %13 = vector.load %arg5[%c0_2, %c0_3] : memref<8x32xf32, #tpu.memory_space<vmem>>, vector<8x32xf32>
    %c0_4 = arith.constant 0 : index
    %c0_5 = arith.constant 0 : index
    %14 = vector.load %arg3[%c0_4, %c0_5] : memref<128x32xbf16, #tpu.memory_space<vmem>>, vector<128x32xbf16>
    %cst = arith.constant dense<0.000000e+00> : vector<8x32xf32>
    %15 = tpu.matmul %12, %14, %cst {dimension_numbers = #tpu.dot_dimension_numbers<[1], [0], [0], [1], [0, 0, 1, 1], [], []>} : vector<8x128xbf16>, vector<128x32xbf16>, vector<8x32xf32> -> vector<8x32xf32>
    %16 = arith.addf %13, %15 : vector<8x32xf32>
    %c0_6 = arith.constant 0 : index
    %c0_7 = arith.constant 0 : index
    %17 = vector.load %arg5[%c0_6, %c0_7] : memref<8x32xf32, #tpu.memory_space<vmem>>, vector<8x32xf32>
    tpu.vector_store %arg5[%c0_6, %c0_7], %16 {strides = array<i32>} : memref<8x32xf32, #tpu.memory_space<vmem>>, vector<8x32xf32>,
    %c0_i32_8 = arith.constant 0 : i32
    %18 = arith.cmpi eq, %arg1, %c0_i32_8 : i32
    %19 = arith.extui %18 : i1 to i32
    %c0_i32_9 = arith.constant 0 : i32
    %20 = arith.cmpi ne, %19, %c0_i32_9 : i32
    scf.if %20 {
      %c0_10 = arith.constant 0 : index
      %c0_11 = arith.constant 0 : index
      %21 = vector.load %arg5[%c0_10, %c0_11] : memref<8x32xf32, #tpu.memory_space<vmem>>, vector<8x32xf32>
      %c0_12 = arith.constant 0 : index
      %c0_13 = arith.constant 0 : index
      %22 = vector.load %arg4[%c0_12, %c0_13] : memref<8x32xf32, #tpu.memory_space<vmem>>, vector<8x32xf32>
      tpu.vector_store %arg4[%c0_12, %c0_13], %21 {strides = array<i32>} : memref<8x32xf32, #tpu.memory_space<vmem>>, vector<8x32xf32>,
    } else {
    }
    return
  }
  func.func @transform_0(%arg0: i32, %arg1: i32) -> (i32, i32) {
    %c0_i32 = arith.constant 0 : i32
    %c0_i32_0 = arith.constant 0 : i32
    return %arg0, %c0_i32 : i32, i32
  }
  func.func @transform_1(%arg0: i32, %arg1: i32) -> (i32, i32) {
    %c0_i32 = arith.constant 0 : i32
    %c0_i32_0 = arith.constant 0 : i32
    return %arg1, %c0_i32 : i32, i32
  }
  func.func @transform_2(%arg0: i32, %arg1: i32) -> (i32, i32) {
    %c0_i32 = arith.constant 0 : i32
    %c0_i32_0 = arith.constant 0 : i32
    return %arg0, %c0_i32 : i32, i32
  }
}

</mosaic_0001>

<llo_original>
// kernel: tpu_custom_call.1
$region0: #{tpu_custom_call.1}
  #allocation0 [shape = 'u32[]', space=smem, size = 0x4, offset = 0x4, fixed_abs, tag = 'smem constant byte address 0x4 - core index']
  #allocation1 [shape = 'u32[144,128]{1,0:T(1,128)}', space=vmem, size = 0x12000, scoped, tag = 'internal scratch']
  #allocation2 [shape = 'f32[8,32]{1,0:T(8,128)}', space=vmem, size = 0x1000, scoped, tag = 'scratch operand']
  %s0 = inlined_call_operand.vmem [shape: s32[16,1], index: 0, kind: input, shape index: {}]
  %s1 = inlined_call_operand.vmem [shape: bf16[128,32], index: 1, kind: input, shape index: {}]
  %s2 = inlined_call_operand.hbm [shape: f32[16,32], index: 2, kind: output, shape index: {}]
  %s3 = sld [smem:[#allocation0]]
  $region49: #{tpu_custom_call.1} parent=0
    _
  %s5 = ssub.s32 1, %s3
  %s6 = scalar_select 0, %s5, %s3
  $region1: #{tpu_custom_call.1} parent=0
    #allocation3 [shape = 'u8[8192]{0}', space=vmem, size = 0x2000, scoped, tag = 'output window, operand 0']
    #allocation4 [shape = 's32[2]{0}', space=sflag, size = 0x8, scoped, tag = 'scoped memory for tpu_custom_call.1']
    %7 = vsyncpa [#allocation4], 0
    %s8 = scalar_lea.sflag [#allocation4], 1
    %9 = vsyncpa %s8, 0
    loop: start=0, step=1, limit=4
    $region2: #{tpu_custom_call.1} parent=1 // loop_pre_header
      _
    $region3: #{tpu_custom_call.1} parent=1 // loop_header
      %s11 = sphi 0, %s15
      %p12 = scmp.ge.s32.totalorder %s11, 4
      %s18 = sphi 0, %s30
      %s19 = sphi 0, %s26
      %s20 = sphi 0, %s18
      %s21 = sphi 0, %s19
      %s22 = sphi 0, %s20
      %s23 = sphi 0, %s21
      %s33 = sphi 0, %s35
      %s36 = sphi 0, %s33
      %s37 = sphi 0, %s36
      %s53 = sphi 0, %s37
      %s59 = sphi 0, %s61
      %s62 = sphi 0, %s59
      %s63 = sphi 0, %s62
      %s79 = sphi 0, %s63
      %s85 = sphi 0, %s87
      %s88 = sphi 0, %s85
      %s89 = sphi 0, %s88
      %s105 = sphi 0, %s89
    $region4: #{tpu_custom_call.1} parent=1 // loop_header_branch
      %14 = sbr.rel (%p12) target = $region8
    $region5: #{tpu_custom_call.1} parent=1 // loop_body
      %s16 = ssub.s32 %s11, 1
      %s17 = ssub.s32 %s11, 2
      %s24 = sadd.s32 1, %s19
      %p25 = scmp.ge.s32.totalorder %s24, 1
      %s26 = scalar_select %p25, 0, %s24
      %s27 = sadd.s32 1, %s18
      %s28 = scalar_select %p25, %s27, %s18
      %p29 = scmp.ge.s32.totalorder %s28, 2
      %s30 = scalar_select %p29, 0, %s28
      %s31 = ssub.s32 %s18, %s30
      %p32 = scmp.eq.s32.totalorder %s31, 0
      %s34 = sadd.s32 %s33, 1
      %s35 = scalar_select %p32, %s33, %s34
      %p38 = pneg %p32
      %p39 = scmp.eq.s32.totalorder %s11, 1
      %p40 = por %p38, %p39
      %p41 = scmp.ne.s32.totalorder %s33, %s36
      %p42 = scmp.eq.s32.totalorder %s11, 0
      %p43 = por %p41, %p42
      %p44 = scmp.ne.s32.totalorder %s33, %s36
      %p45 = scmp.eq.s32.totalorder %s16, 1
      %p46 = por %p44, %p45
      %p47 = scmp.ne.s32.totalorder %s36, %s37
      %p48 = scmp.eq.s32.totalorder %s16, 0
      %p49 = por %p47, %p48
      %p50 = scmp.ne.s32.totalorder %s36, %s37
      %p51 = scmp.eq.s32.totalorder %s17, 1
      %p52 = por %p50, %p51
      %p54 = scmp.ne.s32.totalorder %s37, %s53
      %p55 = scmp.eq.s32.totalorder %s17, 0
      %p56 = por %p54, %p55
      %s57 = ssub.s32 %s19, %s26
      %p58 = scmp.eq.s32.totalorder %s57, 0
      %s60 = sadd.s32 %s59, 1
      %s61 = scalar_select %p58, %s59, %s60
      %p64 = pneg %p58
      %p65 = scmp.eq.s32.totalorder %s11, 1
      %p66 = por %p64, %p65
      %p67 = scmp.ne.s32.totalorder %s59, %s62
      %p68 = scmp.eq.s32.totalorder %s11, 0
      %p69 = por %p67, %p68
      %p70 = scmp.ne.s32.totalorder %s59, %s62
      %p71 = scmp.eq.s32.totalorder %s16, 1
      %p72 = por %p70, %p71
      %p73 = scmp.ne.s32.totalorder %s62, %s63
      %p74 = scmp.eq.s32.totalorder %s16, 0
      %p75 = por %p73, %p74
      %p76 = scmp.ne.s32.totalorder %s62, %s63
      %p77 = scmp.eq.s32.totalorder %s17, 1
      %p78 = por %p76, %p77
      %p80 = scmp.ne.s32.totalorder %s63, %s79
      %p81 = scmp.eq.s32.totalorder %s17, 0
      %p82 = por %p80, %p81
      %s83 = ssub.s32 %s18, %s30
      %p84 = scmp.eq.s32.totalorder %s83, 0
      %s86 = sadd.s32 %s85, 1
      %s87 = scalar_select %p84, %s85, %s86
      %p90 = pneg %p84
      %p91 = scmp.eq.s32.totalorder %s11, 1
      %p92 = por %p90, %p91
      %p93 = scmp.ne.s32.totalorder %s85, %s88
      %p94 = scmp.eq.s32.totalorder %s11, 0
      %p95 = por %p93, %p94
      %p96 = scmp.ne.s32.totalorder %s85, %s88
      %p97 = scmp.eq.s32.totalorder %s16, 1
      %p98 = por %p96, %p97
      %p99 = scmp.ne.s32.totalorder %s88, %s89
      %p100 = scmp.eq.s32.totalorder %s16, 0
      %p101 = por %p99, %p100
      %p102 = scmp.ne.s32.totalorder %s88, %s89
      %p103 = scmp.eq.s32.totalorder %s17, 1
      %p104 = por %p102, %p103
      %p106 = scmp.ne.s32.totalorder %s89, %s105
      %p107 = scmp.eq.s32.totalorder %s17, 0
      %p108 = por %p106, %p107
      %p109 = scmp.le.s32.totalorder 1, %s11
      %p110 = scmp.lt.s32.totalorder %s11, 3
      %p111 = pnand %p109, %p110
      %p112 = pneg %p111
      // Predicated region
      $region9: #{tpu_custom_call.1} parent=5 // pred_check
        _
      $region10: #{tpu_custom_call.1} parent=5 // pred_check_branch
        %114 = sbr.rel (%p111) target = $region12
      $region11: #{tpu_custom_call.1} parent=5 // pred_region
        %s115 = ssub.s32 %s11, 1
        // Predicated region
        $region13: #{tpu_custom_call.1} parent=11 // pred_check
          %p116 = pneg %p75
        $region14: #{tpu_custom_call.1} parent=11 // pred_check_branch
          %118 = sbr.rel (%p116) target = $region16
        $region15: #{tpu_custom_call.1} parent=11 // pred_region
          %s119 = smul.u32 16, %s21
          %p120 = scmp.lt.s32.totalorder %s119, 15
          %s121 = scalar_select %p120, %s119, 15
          %s122 = smul.addr %s121, 4
          %s123 = scalar_lea.vmem %s1, %s122
          %s124 = smul.u32 16, %s21
        $region16: #{tpu_custom_call.1} parent=11 // pred_fallthru
          _
      $region12: #{tpu_custom_call.1} parent=5 // pred_fallthru
        _
      %p125 = scmp.lt.s32.totalorder %s11, 2
      // Predicated region
      $region17: #{tpu_custom_call.1} parent=5 // pred_check
        %p126 = pneg %p125
      $region18: #{tpu_custom_call.1} parent=5 // pred_check_branch
        %128 = sbr.rel (%p126) target = $region20
      $region19: #{tpu_custom_call.1} parent=5 // pred_region
        // Predicated region
        $region21: #{tpu_custom_call.1} parent=19 // pred_check
          %p129 = pneg %p43
        $region22: #{tpu_custom_call.1} parent=19 // pred_check_branch
          %131 = sbr.rel (%p129) target = $region24
        $region23: #{tpu_custom_call.1} parent=19 // pred_region
          %p132 = scmp.lt.s32.totalorder %s18, 1
          %s133 = scalar_select %p132, %s18, 1
          %s134 = smul.addr %s133, 8
          %s135 = scalar_lea.vmem %s0, %s134
        $region24: #{tpu_custom_call.1} parent=19 // pred_fallthru
          _
      $region20: #{tpu_custom_call.1} parent=5 // pred_fallthru
        _
      %p136 = scmp.le.s32.totalorder 1, %s11
      %p137 = scmp.lt.s32.totalorder %s11, 3
      %p138 = pnand %p136, %p137
      %p139 = pneg %p138
      // Predicated region
      $region25: #{tpu_custom_call.1} parent=5 // pred_check
        _
      $region26: #{tpu_custom_call.1} parent=5 // pred_check_branch
        %141 = sbr.rel (%p138) target = $region28
      $region27: #{tpu_custom_call.1} parent=5 // pred_region
        %s142 = ssub.s32 %s11, 1
        %p143 = scmp.lt.s32.totalorder %s20, 1
        %s144 = scalar_select %p143, %s20, 1
        %s145 = smul.addr %s144, 8
        %s146 = scalar_lea.vmem %s0, %s145
        %p147 = pneg %p49
        %p148 = pneg %p46
        %s149 = smul.u32 16, %s21
        %p150 = scmp.lt.s32.totalorder %s149, 15
        %s151 = scalar_select %p150, %s149, 15
        %s152 = smul.addr %s151, 4
        %s153 = scalar_lea.vmem %s1, %s152
        %p154 = pneg %p75
        %p155 = pneg %p72
        %p156 = pneg %p101
        %p157 = pneg %p98
        %s158 = sand.u32 %s88, 1
        %s159 = scalar_lea.sflag [#allocation4], %s158
        %s160 = sand.u32 %s88, 1
        %s161 = smul.addr %s160, 8
        %s162 = scalar_lea.vmem [#allocation3], %s161
        %p163 = scmp.lt.s32.totalorder %s20, 1
        %s164 = scalar_select %p163, %s20, 1
        %s165 = smul.addr %s164, 8
        %s166 = scalar_lea.vmem %s0, %s165
        %s167 = smul.u32 16, %s21
        %p168 = scmp.lt.s32.totalorder %s167, 15
        %s169 = scalar_select %p168, %s167, 15
        %s170 = smul.addr %s169, 4
        %s171 = scalar_lea.vmem %s1, %s170
        %s172 = smul.u32 16, %s21
        %p174 = scmp.eq.s32.totalorder %s21, 0
        // Predicated region
        $region29: #{tpu_custom_call.1} parent=27 // pred_check
          %p175 = pneg %p174
        $region30: #{tpu_custom_call.1} parent=27 // pred_check_branch
          %177 = sbr.rel (%p175) target = $region32
        $region31: #{tpu_custom_call.1} parent=27 // pred_region
          %vm178 = vcmask 261120
          %179 = vst.msk [vmem:[#allocation2] sm:$0xff] %vm178, 0.0
        $region32: #{tpu_custom_call.1} parent=27 // pred_fallthru
          _
        %v180 = vld [vmem:[%s166] sm:$0xff]
        %s181 = smul.u32 %s21, 128
        %v182 = vstv %s181
        %v183 = vsub.s32 %v180, %v182
        %v184 = vlaneseq
        %v185 = vand.u32 %v184, 127
        %186 = vset.pattern.permute.xlu0 0
        %187 = vperm.xlu0 %186, %v183
        %v188 = vpop.permute.xlu0 %187
        %vm189 = vcmp.eq.s32.totalorder %v188, %v185
        %v190 = vsel %vm189, 1, 0
        %v191 = vcvt.s32.f32 %v190
        %v192 = vpack.c.bf16 %v191, %v191
        %v193 = vld [vmem:[#allocation2] sm:$0xff]
        %v194 = vld [vmem:[%s171] sm:$0xf]
        %v195 = vld [vmem:[%s171 + $0x4] sm:$0xf]
        %v196 = vld [vmem:[%s171 + $0x8] sm:$0xf]
        %v197 = vld [vmem:[%s171 + $0xc] sm:$0xf]
        %v198 = vld [vmem:[%s171 + $0x10] sm:$0xf]
        %v199 = vld [vmem:[%s171 + $0x14] sm:$0xf]
        %v200 = vld [vmem:[%s171 + $0x18] sm:$0xf]
        %v201 = vld [vmem:[%s171 + $0x1c] sm:$0xf]
        %v202 = vld [vmem:[%s171 + $0x20] sm:$0xf]
        %v203 = vld [vmem:[%s171 + $0x24] sm:$0xf]
        %v204 = vld [vmem:[%s171 + $0x28] sm:$0xf]
        %v205 = vld [vmem:[%s171 + $0x2c] sm:$0xf]
        %v206 = vld [vmem:[%s171 + $0x30] sm:$0xf]
        %v207 = vld [vmem:[%s171 + $0x34] sm:$0xf]
        %v208 = vld [vmem:[%s171 + $0x38] sm:$0xf]
        %v209 = vld [vmem:[%s171 + $0x3c] sm:$0xf]
        %v226 = vunpack.c.l.b16 %v194
        %v227 = vunpack.c.l.b16 %v195
        %v228 = vunpack.c.l.b16 %v196
        %v229 = vunpack.c.l.b16 %v197
        %v230 = vunpack.c.l.b16 %v198
        %v231 = vunpack.c.l.b16 %v199
        %v232 = vunpack.c.l.b16 %v200
        %v233 = vunpack.c.l.b16 %v201
        %v234 = vunpack.c.l.b16 %v202
        %v235 = vunpack.c.l.b16 %v203
        %v236 = vunpack.c.l.b16 %v204
        %v237 = vunpack.c.l.b16 %v205
        %v238 = vunpack.c.l.b16 %v206
        %v239 = vunpack.c.l.b16 %v207
        %v240 = vunpack.c.l.b16 %v208
        %v241 = vunpack.c.l.b16 %v209
        %v242 = vpack.c.b16 %v227, %v226
        %v243 = vpack.c.b16 %v229, %v228
        %v244 = vpack.c.b16 %v231, %v230
        %v245 = vpack.c.b16 %v233, %v232
        %v246 = vpack.c.b16 %v235, %v234
        %v247 = vpack.c.b16 %v237, %v236
        %v248 = vpack.c.b16 %v239, %v238
        %v249 = vpack.c.b16 %v241, %v240
        %258 = vmatprep.subr.bf16.mxu0 0
        %259 = vmatpush1.bf16.msra.mxu0 %v242
        %260 = vmatprep.subr.bf16.mxu0 0
        %261 = vmatpush1.bf16.msra.mxu0 %v243
        %262 = vmatprep.subr.bf16.mxu0 0
        %263 = vmatpush1.bf16.msra.mxu0 %v244
        %264 = vmatprep.subr.bf16.mxu0 0
        %265 = vmatpush1.bf16.msra.mxu0 %v245
        %266 = vmatprep.subr.bf16.mxu0 0
        %267 = vmatpush1.bf16.msra.mxu0 %v246
        %268 = vmatprep.subr.bf16.mxu0 0
        %269 = vmatpush1.bf16.msra.mxu0 %v247
        %270 = vmatprep.subr.bf16.mxu0 0
        %271 = vmatpush1.bf16.msra.mxu0 %v248
        %272 = vmatprep.subr.bf16.mxu0 0
        %273 = vmatpush1.bf16.msra.mxu0 %v249
        %274 = vmatprep.subr.bf16.mxu0 0
        %275 = vmatpush1.bf16.msra.mxu0 0
        %276 = vmatprep.subr.bf16.mxu0 0
        %277 = vmatpush1.bf16.msra.mxu0 0
        %278 = vmatprep.subr.bf16.mxu0 0
        %279 = vmatpush1.bf16.msra.mxu0 0
        %280 = vmatprep.subr.bf16.mxu0 0
        %281 = vmatpush1.bf16.msra.mxu0 0
        %282 = vmatprep.subr.bf16.mxu0 0
        %283 = vmatpush1.bf16.msra.mxu0 0
        %284 = vmatprep.subr.bf16.mxu0 0
        %285 = vmatpush1.bf16.msra.mxu0 0
        %286 = vmatprep.subr.bf16.mxu0 0
        %287 = vmatpush1.bf16.msra.mxu0 0
        %288 = vmatprep.subr.bf16.mxu0 0
        %289 = vmatpush1.bf16.msra.mxu0 0
        %290 = vmatprep.mubr.bf16.mxu0 0
        %291 = vmatmul.mubr.bf16.gmra.mrb[0].mxu0 %v192
        %v292 = vpop.f32.mrb[0].mxu0
        %v293 = vadd.f32 0.0, %v292
        %v294 = vpop.f32.mrb[0].mxu0
        %v295 = vpop.f32.mrb[0].mxu0
        %v296 = vpop.f32.mrb[0].mxu0
        %297 = vdwg.mxu0
        %v298 = vadd.f32 %v193, %v293
        %vm299 = vcmask 261120
        %300 = vst.msk [vmem:[#allocation2] sm:$0xff] %vm299, %v298
        // Predicated region
        $region33: #{tpu_custom_call.1} parent=27 // pred_check
          %p301 = pneg %p174
        $region34: #{tpu_custom_call.1} parent=27 // pred_check_branch
          %303 = sbr.rel (%p301) target = $region36
        $region35: #{tpu_custom_call.1} parent=27 // pred_region
          %v304 = vld [vmem:[#allocation2] sm:$0xff]
          %305 = vst.msk [vmem:[%s162] sm:$0xff] %vm299, %v304
        $region36: #{tpu_custom_call.1} parent=27 // pred_fallthru
          _
        %s306 = sand.u32 %s88, 1
        %s307 = scalar_lea.sflag [#allocation4], %s306
        %s308 = sand.u32 %s88, 1
        %s309 = smul.addr %s308, 8
        %s310 = scalar_lea.vmem [#allocation3], %s309
        // Predicated region
        $region37: #{tpu_custom_call.1} parent=27 // pred_check
          %p311 = pneg %p98
        $region38: #{tpu_custom_call.1} parent=27 // pred_check_branch
          %313 = sbr.rel (%p311) target = $region40
        $region39: #{tpu_custom_call.1} parent=27 // pred_region
          %s315 = ssub.s32 128, 128
          %316 = vsyncadd %s307, %s315
          %s317 = smul.addr %s20, 128
          %s318 = scalar_lea.hbm %s2, %s317
          %s320 = sshll.u32 %s310, 4
          %s321 = int_to_ptr.vmem [resolvable:$true] %s320
          %323 = dma.vmem_to_hbm [thread:$0]  %s321, 128, %s318, %s307
        $region40: #{tpu_custom_call.1} parent=27 // pred_fallthru
          _
      $region28: #{tpu_custom_call.1} parent=5 // pred_fallthru
        _
      %p324 = scmp.le.s32.totalorder 2, %s11
      // Predicated region
      $region41: #{tpu_custom_call.1} parent=5 // pred_check
        %p325 = pneg %p324
      $region42: #{tpu_custom_call.1} parent=5 // pred_check_branch
        %327 = sbr.rel (%p325) target = $region44
      $region43: #{tpu_custom_call.1} parent=5 // pred_region
        %s328 = ssub.s32 %s11, 2
        // Predicated region
        $region45: #{tpu_custom_call.1} parent=43 // pred_check
          %p329 = pneg %p104
        $region46: #{tpu_custom_call.1} parent=43 // pred_check_branch
          %331 = sbr.rel (%p329) target = $region48
        $region47: #{tpu_custom_call.1} parent=43 // pred_region
          %s332 = sand.u32 %s89, 1
          %s333 = scalar_lea.sflag [#allocation4], %s332
          %s334 = sand.u32 %s89, 1
          %s335 = smul.addr %s334, 8
          %s336 = scalar_lea.vmem [#allocation3], %s335
          %337 = dma.done %s333, 128
        $region48: #{tpu_custom_call.1} parent=43 // pred_fallthru
          _
      $region44: #{tpu_custom_call.1} parent=5 // pred_fallthru
        _
    $region6: #{tpu_custom_call.1} parent=1 // loop_footer
      %s15 = sadd.s32 1, %s11
    $region7: #{tpu_custom_call.1} parent=1 // loop_footer_branch
      %10 = sbr.rel target = $region3
    $region8: #{tpu_custom_call.1} parent=1 // loop_exit
      _
    %338 = vsyncpa [#allocation4], 1
    %s339 = scalar_lea.sflag [#allocation4], 1
    %340 = vsyncpa %s339, 1

</llo_original>
